<compile_context>
chip_gen: v6e
topology: v6e:2x2x1
jax: 0.10.0
libtpu: 0.0.40
codegen_flags: <defaults>
</compile_context>

<pallas_src>
import functools

import jax
import jax.numpy as jnp
from jax.experimental import pallas as pl
from jax.experimental.pallas import tpu as pltpu


H1 = 400
H2 = 200
NEG_SLOPE = 0.01  # nn.LeakyReLU default
LANE = 128


def _round_up(n, m):
    return ((n + m - 1) // m) * m


def _leaky_relu(x):
    return jnp.where(x >= 0, x, NEG_SLOPE * x)


def policy_mlp_kernel(x_ref, w1_ref, b1_ref, w2_ref, b2_ref, w3_ref, b3_ref,
                      o_ref):
    # Layer 1: (TB, in_dim) @ (in_dim, 512) -> f32, +bias, LeakyReLU
    h = jnp.dot(x_ref[...], w1_ref[...], preferred_element_type=jnp.float32)
    h = _leaky_relu(h + b1_ref[...])
    # Layer 2: (TB, 512) @ (512, 256) -> f32, +bias, LeakyReLU
    h = jnp.dot(h.astype(jnp.bfloat16), w2_ref[...],
                preferred_element_type=jnp.float32)
    h = _leaky_relu(h + b2_ref[...])
    # Layer 3: (TB, 256) @ (256, 128) -> f32, +bias, tanh
    h = jnp.dot(h.astype(jnp.bfloat16), w3_ref[...],
                preferred_element_type=jnp.float32)
    o_ref[...] = jnp.tanh(h + b3_ref[...]).astype(o_ref.dtype)


@functools.partial(jax.jit, static_argnames=("block_b",))
def policy_network_forward(x, params, *, block_b=256):
    """Fused 3-layer MLP forward.

    x: any shape reshapeable to (-1, in_dim), float32.
    params: (w1, b1, w2, b2, w3, b3) with weights stored (in_features,
            out_features) and biases (1, out_features), float32.
    Returns (B, out_dim) float32.
    """
    w1, b1, w2, b2, w3, b3 = params
    in_dim = w1.shape[0]
    out_dim = w3.shape[1]

    # torch: x.reshape(-1, in_dim)
    x = x.reshape(-1, in_dim)
    B = x.shape[0]

    # ---- Lane-align feature dims (zero-pad weights/biases). -------------
    h1p = _round_up(H1, LANE)        # 512
    h2p = _round_up(H2, LANE)        # 256
    outp = _round_up(out_dim, LANE)  # 128

    def pad2(a, rows, cols):
        return jnp.pad(a, ((0, rows - a.shape[0]), (0, cols - a.shape[1])))

    w1p = pad2(w1, in_dim, h1p).astype(jnp.bfloat16)
    w2p = pad2(w2, h1p, h2p).astype(jnp.bfloat16)
    w3p = pad2(w3, h2p, outp).astype(jnp.bfloat16)
    b1p = pad2(b1, 1, h1p)   # biases stay f32
    b2p = pad2(b2, 1, h2p)
    b3p = pad2(b3, 1, outp)

    # ---- Batch tiling: stream activations, keep weights resident. -------
    tb = min(block_b, _round_up(B, 8))     # multiple of 8, up to block_b
    b_pad = _round_up(B, tb)
    x_p = jnp.pad(x, ((0, b_pad - B), (0, 0))).astype(jnp.bfloat16)
    grid = (b_pad // tb,)

    const = lambda shape: pl.BlockSpec(shape, lambda i: (0, 0))

    nbytes = lambda a: a.size * a.dtype.itemsize
    flops = 2 * b_pad * (in_dim * h1p + h1p * h2p + h2p * outp)
    bytes_accessed = (nbytes(x_p) + nbytes(w1p) + nbytes(w2p) + nbytes(w3p)
                      + nbytes(b1p) + nbytes(b2p) + nbytes(b3p)
                      + b_pad * outp * 4)
    cost = pl.CostEstimate(flops=flops,
                           transcendentals=b_pad * outp,  # tanh
                           bytes_accessed=bytes_accessed)

    out_p = pl.pallas_call(
        policy_mlp_kernel,
        out_shape=jax.ShapeDtypeStruct((b_pad, outp), jnp.float32),
        grid_spec=pltpu.PrefetchScalarGridSpec(
            num_scalar_prefetch=0,
            grid=grid,
            in_specs=[
                pl.BlockSpec((tb, in_dim), lambda i: (i, 0)),  # x: streamed
                const((in_dim, h1p)), const((1, h1p)),         # resident
                const((h1p, h2p)), const((1, h2p)),
                const((h2p, outp)), const((1, outp)),
            ],
            out_specs=pl.BlockSpec((tb, outp), lambda i: (i, 0)),
        ),
        compiler_params=pltpu.CompilerParams(
            dimension_semantics=("parallel",),
        ),
        cost_estimate=cost,
    )(x_p, w1p, b1p, w2p, b2p, w3p, b3p)

    return out_p[:B, :out_dim]


def init_params(key, in_dim, out_dim):
    """Deterministic init mimicking torch.nn.Linear default (uniform +-1/sqrt(fan_in)).
    Weights stored (in_features, out_features), biases (1, out_features)."""
    ks = jax.random.split(key, 6)

    def linear(kw, kb, fan_in, fan_out):
        bound = 1.0 / jnp.sqrt(fan_in)
        w = jax.random.uniform(kw, (fan_in, fan_out), jnp.float32, -bound, bound)
        b = jax.random.uniform(kb, (1, fan_out), jnp.float32, -bound, bound)
        return w, b

    w1, b1 = linear(ks[0], ks[1], in_dim, H1)
    w2, b2 = linear(ks[2], ks[3], H1, H2)
    w3, b3 = linear(ks[4], ks[5], H2, out_dim)
    return (w1, b1, w2, b2, w3, b3)


# TODO(synk): loss()/optimize() (Adam step) are training-side and not part of
# the forward pass; not implemented as kernels.

if __name__ == "__main__":
    in_dim, out_dim, batch = 16, 4, 8

    key = jax.random.PRNGKey(0)
    k_x, k_p = jax.random.split(key)
    x = jax.random.normal(k_x, (batch, in_dim), jnp.float32)
    params = init_params(k_p, in_dim, out_dim)

    w1, b1, w2, b2, w3, b3 = params
    lrelu = lambda v: jnp.where(v >= 0, v, NEG_SLOPE * v)
    ref_fn = lambda xx: jnp.tanh(lrelu(lrelu(xx @ w1 + b1) @ w2 + b2) @ w3 + b3)

    # Small-batch path (single tile).
    out = policy_network_forward(x, params)
    jax.block_until_ready(out)
    assert out.shape == (batch, out_dim)
    assert jnp.allclose(out, ref_fn(x), atol=3e-2, rtol=3e-2), \
        "mismatch vs reference (small batch)"

    # Multi-tile path with a ragged tail (exercises batch grid + padding).
    x_big = jax.random.normal(jax.random.PRNGKey(1), (300, in_dim), jnp.float32)
    out_big = policy_network_forward(x_big, params)
    jax.block_until_ready(out_big)
    assert out_big.shape == (300, out_dim)
    assert jnp.allclose(out_big, ref_fn(x_big), atol=3e-2, rtol=3e-2), \
        "mismatch vs reference (multi-tile batch)"

    print("KERNEL_OK")
</pallas_src>

<mosaic_0001>
module attributes {stable_mosaic.version = 11 : i64} {
  func.func @policy_mlp_kernel(%arg0: i32, %arg1: memref<8x16xbf16, #tpu.memory_space<vmem>>, %arg2: memref<16x512xbf16, #tpu.memory_space<vmem>>, %arg3: memref<1x512xf32, #tpu.memory_space<vmem>>, %arg4: memref<512x256xbf16, #tpu.memory_space<vmem>>, %arg5: memref<1x256xf32, #tpu.memory_space<vmem>>, %arg6: memref<256x128xbf16, #tpu.memory_space<vmem>>, %arg7: memref<1x128xf32, #tpu.memory_space<vmem>>, %arg8: memref<8x128xf32, #tpu.memory_space<vmem>>) attributes {dimension_semantics = [#tpu.dimension_semantics<parallel>], iteration_bounds = array<i64: 1>, scalar_prefetch = 0 : i64, scratch_operands = 0 : i64, tpu.core_type = #tpu.core_type<tc>, window_params = [{transform_indices = @transform_0, window_bounds = array<i64: 8, 16>}, {pipeline_mode = #tpu.pipeline_mode<synchronous>, transform_indices = @transform_1, window_bounds = array<i64: 16, 512>}, {pipeline_mode = #tpu.pipeline_mode<synchronous>, transform_indices = @transform_2, window_bounds = array<i64: 1, 512>}, {pipeline_mode = #tpu.pipeline_mode<synchronous>, transform_indices = @transform_3, window_bounds = array<i64: 512, 256>}, {pipeline_mode = #tpu.pipeline_mode<synchronous>, transform_indices = @transform_4, window_bounds = array<i64: 1, 256>}, {pipeline_mode = #tpu.pipeline_mode<synchronous>, transform_indices = @transform_5, window_bounds = array<i64: 256, 128>}, {pipeline_mode = #tpu.pipeline_mode<synchronous>, transform_indices = @transform_6, window_bounds = array<i64: 1, 128>}, {transform_indices = @transform_7, window_bounds = array<i64: 8, 128>}]} {
    %c0 = arith.constant 0 : index
    %c0_0 = arith.constant 0 : index
    %0 = vector.load %arg1[%c0, %c0_0] : memref<8x16xbf16, #tpu.memory_space<vmem>>, vector<8x16xbf16>
    %c0_1 = arith.constant 0 : index
    %c0_2 = arith.constant 0 : index
    %1 = vector.load %arg2[%c0_1, %c0_2] : memref<16x512xbf16, #tpu.memory_space<vmem>>, vector<16x512xbf16>
    %cst = arith.constant dense<0.000000e+00> : vector<8x512xf32>
    %2 = tpu.matmul %0, %1, %cst {dimension_numbers = #tpu.dot_dimension_numbers<[1], [0], [0], [1], [0, 0, 1, 1], [], []>} : vector<8x16xbf16>, vector<16x512xbf16>, vector<8x512xf32> -> vector<8x512xf32>
    %c0_3 = arith.constant 0 : index
    %c0_4 = arith.constant 0 : index
    %3 = vector.load %arg3[%c0_3, %c0_4] : memref<1x512xf32, #tpu.memory_space<vmem>>, vector<1x512xf32>
    %4 = vector.broadcast %3 : vector<1x512xf32> to vector<8x512xf32>
    %5 = arith.addf %2, %4 : vector<8x512xf32>
    %cst_5 = arith.constant 0.000000e+00 : f32
    %6 = vector.broadcast %cst_5 : f32 to vector<8x512xf32>
    %7 = arith.cmpf oge, %5, %6 : vector<8x512xf32>
    %cst_6 = arith.constant 0.00999999977 : f32
    %8 = vector.broadcast %cst_6 : f32 to vector<8x512xf32>
    %9 = arith.mulf %8, %5 : vector<8x512xf32>
    %10 = arith.select %7, %5, %9 : vector<8x512xi1>, vector<8x512xf32>
    %11 = arith.truncf %10 : vector<8x512xf32> to vector<8x512xbf16>
    %c0_7 = arith.constant 0 : index
    %c0_8 = arith.constant 0 : index
    %12 = vector.load %arg4[%c0_7, %c0_8] : memref<512x256xbf16, #tpu.memory_space<vmem>>, vector<512x256xbf16>
    %cst_9 = arith.constant dense<0.000000e+00> : vector<8x256xf32>
    %13 = tpu.matmul %11, %12, %cst_9 {dimension_numbers = #tpu.dot_dimension_numbers<[1], [0], [0], [1], [0, 0, 1, 1], [], []>} : vector<8x512xbf16>, vector<512x256xbf16>, vector<8x256xf32> -> vector<8x256xf32>
    %c0_10 = arith.constant 0 : index
    %c0_11 = arith.constant 0 : index
    %14 = vector.load %arg5[%c0_10, %c0_11] : memref<1x256xf32, #tpu.memory_space<vmem>>, vector<1x256xf32>
    %15 = vector.broadcast %14 : vector<1x256xf32> to vector<8x256xf32>
    %16 = arith.addf %13, %15 : vector<8x256xf32>
    %cst_12 = arith.constant 0.000000e+00 : f32
    %17 = vector.broadcast %cst_12 : f32 to vector<8x256xf32>
    %18 = arith.cmpf oge, %16, %17 : vector<8x256xf32>
    %cst_13 = arith.constant 0.00999999977 : f32
    %19 = vector.broadcast %cst_13 : f32 to vector<8x256xf32>
    %20 = arith.mulf %19, %16 : vector<8x256xf32>
    %21 = arith.select %18, %16, %20 : vector<8x256xi1>, vector<8x256xf32>
    %22 = arith.truncf %21 : vector<8x256xf32> to vector<8x256xbf16>
    %c0_14 = arith.constant 0 : index
    %c0_15 = arith.constant 0 : index
    %23 = vector.load %arg6[%c0_14, %c0_15] : memref<256x128xbf16, #tpu.memory_space<vmem>>, vector<256x128xbf16>
    %cst_16 = arith.constant dense<0.000000e+00> : vector<8x128xf32>
    %24 = tpu.matmul %22, %23, %cst_16 {dimension_numbers = #tpu.dot_dimension_numbers<[1], [0], [0], [1], [0, 0, 1, 1], [], []>} : vector<8x256xbf16>, vector<256x128xbf16>, vector<8x128xf32> -> vector<8x128xf32>
    %c0_17 = arith.constant 0 : index
    %c0_18 = arith.constant 0 : index
    %25 = vector.load %arg7[%c0_17, %c0_18] : memref<1x128xf32, #tpu.memory_space<vmem>>, vector<1x128xf32>
    %26 = vector.broadcast %25 : vector<1x128xf32> to vector<8x128xf32>
    %27 = arith.addf %24, %26 : vector<8x128xf32>
    %28 = math.tanh %27 : vector<8x128xf32>
    %c0_19 = arith.constant 0 : index
    %c0_20 = arith.constant 0 : index
    %29 = vector.load %arg8[%c0_19, %c0_20] : memref<8x128xf32, #tpu.memory_space<vmem>>, vector<8x128xf32>
    tpu.vector_store %arg8[%c0_19, %c0_20], %28 {strides = array<i32>} : memref<8x128xf32, #tpu.memory_space<vmem>>, vector<8x128xf32>,
    return
  }
  func.func @transform_0(%arg0: i32) -> (i32, i32) {
    %c0_i32 = arith.constant 0 : i32
    %c0_i32_0 = arith.constant 0 : i32
    return %arg0, %c0_i32 : i32, i32
  }
  func.func @transform_1(%arg0: i32) -> (i32, i32) {
    %c0_i32 = arith.constant 0 : i32
    %c0_i32_0 = arith.constant 0 : i32
    %c0_i32_1 = arith.constant 0 : i32
    return %c0_i32, %c0_i32_0 : i32, i32
  }
  func.func @transform_2(%arg0: i32) -> (i32, i32) {
    %c0_i32 = arith.constant 0 : i32
    %c0_i32_0 = arith.constant 0 : i32
    %c0_i32_1 = arith.constant 0 : i32
    return %c0_i32, %c0_i32_0 : i32, i32
  }
  func.func @transform_3(%arg0: i32) -> (i32, i32) {
    %c0_i32 = arith.constant 0 : i32
    %c0_i32_0 = arith.constant 0 : i32
    %c0_i32_1 = arith.constant 0 : i32
    return %c0_i32, %c0_i32_0 : i32, i32
  }
  func.func @transform_4(%arg0: i32) -> (i32, i32) {
    %c0_i32 = arith.constant 0 : i32
    %c0_i32_0 = arith.constant 0 : i32
    %c0_i32_1 = arith.constant 0 : i32
    return %c0_i32, %c0_i32_0 : i32, i32
  }
  func.func @transform_5(%arg0: i32) -> (i32, i32) {
    %c0_i32 = arith.constant 0 : i32
    %c0_i32_0 = arith.constant 0 : i32
    %c0_i32_1 = arith.constant 0 : i32
    return %c0_i32, %c0_i32_0 : i32, i32
  }
  func.func @transform_6(%arg0: i32) -> (i32, i32) {
    %c0_i32 = arith.constant 0 : i32
    %c0_i32_0 = arith.constant 0 : i32
    %c0_i32_1 = arith.constant 0 : i32
    return %c0_i32, %c0_i32_0 : i32, i32
  }
  func.func @transform_7(%arg0: i32) -> (i32, i32) {
    %c0_i32 = arith.constant 0 : i32
    %c0_i32_0 = arith.constant 0 : i32
    return %arg0, %c0_i32 : i32, i32
  }
}

</mosaic_0001>

<llo_original>
// kernel: policy_network_forward.1
$region0: #{policy_network_forward.1}
  #allocation0 [shape = 'u32[]', space=smem, size = 0x4, offset = 0x4, fixed_abs, tag = 'smem constant byte address 0x4 - core index']
  #allocation1 [shape = 'u32[144,128]{1,0:T(1,128)}', space=vmem, size = 0x12000, scoped, tag = 'internal scratch']
  %s0 = inlined_call_operand.vmem [shape: bf16[8,16], index: 0, kind: input, shape index: {}]
  %s1 = inlined_call_operand.vmem [shape: bf16[16,512], index: 1, kind: input, shape index: {}]
  %s2 = inlined_call_operand.vmem [shape: f32[1,512], index: 2, kind: input, shape index: {}]
  %s3 = inlined_call_operand.vmem [shape: bf16[512,256], index: 3, kind: input, shape index: {}]
  %s4 = inlined_call_operand.vmem [shape: f32[1,256], index: 4, kind: input, shape index: {}]
  %s5 = inlined_call_operand.vmem [shape: bf16[256,128], index: 5, kind: input, shape index: {}]
  %s6 = inlined_call_operand.vmem [shape: f32[1,128], index: 6, kind: input, shape index: {}]
  %s7 = inlined_call_operand.vmem [shape: f32[8,128], index: 7, kind: output, shape index: {}]
  %s8 = sld [smem:[#allocation0]]
  $region38: #{policy_network_forward.1} parent=0
    _
  %s10 = ssub.s32 1, %s8
  %s11 = scalar_select 0, %s10, %s8
  // Predicated region
  $region2: #{policy_network_forward.1} parent=0 // pred_check
    _
  $region3: #{policy_network_forward.1} parent=0 // pred_check_branch
    %13 = sbr.rel (0) target = $region5
  $region4: #{policy_network_forward.1} parent=0 // pred_region
    _
  $region5: #{policy_network_forward.1} parent=0 // pred_fallthru
    _
  // Predicated region
  $region6: #{policy_network_forward.1} parent=0 // pred_check
    _
  $region7: #{policy_network_forward.1} parent=0 // pred_check_branch
    %15 = sbr.rel (0) target = $region9
  $region8: #{policy_network_forward.1} parent=0 // pred_region
    _
  $region9: #{policy_network_forward.1} parent=0 // pred_fallthru
    _
  // Predicated region
  $region10: #{policy_network_forward.1} parent=0 // pred_check
    _
  $region11: #{policy_network_forward.1} parent=0 // pred_check_branch
    %17 = sbr.rel (0) target = $region13
  $region12: #{policy_network_forward.1} parent=0 // pred_region
    _
  $region13: #{policy_network_forward.1} parent=0 // pred_fallthru
    _
  // Predicated region
  $region14: #{policy_network_forward.1} parent=0 // pred_check
    _
  $region15: #{policy_network_forward.1} parent=0 // pred_check_branch
    %19 = sbr.rel (0) target = $region17
  $region16: #{policy_network_forward.1} parent=0 // pred_region
    _
  $region17: #{policy_network_forward.1} parent=0 // pred_fallthru
    _
  // Predicated region
  $region18: #{policy_network_forward.1} parent=0 // pred_check
    _
  $region19: #{policy_network_forward.1} parent=0 // pred_check_branch
    %21 = sbr.rel (0) target = $region21
  $region20: #{policy_network_forward.1} parent=0 // pred_region
    _
  $region21: #{policy_network_forward.1} parent=0 // pred_fallthru
    _
  // Predicated region
  $region22: #{policy_network_forward.1} parent=0 // pred_check
    _
  $region23: #{policy_network_forward.1} parent=0 // pred_check_branch
    %23 = sbr.rel (0) target = $region25
  $region24: #{policy_network_forward.1} parent=0 // pred_region
    _
  $region25: #{policy_network_forward.1} parent=0 // pred_fallthru
    _
  // Predicated region
  $region26: #{policy_network_forward.1} parent=0 // pred_check
    _
  $region27: #{policy_network_forward.1} parent=0 // pred_check_branch
    %25 = sbr.rel (0) target = $region29
  $region28: #{policy_network_forward.1} parent=0 // pred_region
    _
  $region29: #{policy_network_forward.1} parent=0 // pred_fallthru
    _
  %v27 = vld [vmem:[%s0] sm:$0xf]
  %v28 = vld [vmem:[%s1] sm:$0xff]
  %v29 = vld [vmem:[%s1 + $0x8] sm:$0xff]
  %v30 = vld [vmem:[%s1 + $0x10] sm:$0xff]
  %v31 = vld [vmem:[%s1 + $0x18] sm:$0xff]
  %v32 = vld [vmem:[%s2] sm:$0xf]
  %v34 = vlaneseq
  %v35 = vshrl.u32 %v34, 7
  %v36 = vsub.s32 0, %v35
  %v37 = vrot.slane %v32, %v36
  %v38 = vlaneseq
  %v39 = vshrl.u32 %v38, 7
  %v40 = vsub.s32 1, %v39
  %v41 = vrot.slane %v32, %v40
  %v42 = vlaneseq
  %v43 = vshrl.u32 %v42, 7
  %v44 = vsub.s32 2, %v43
  %v45 = vrot.slane %v32, %v44
  %v46 = vlaneseq
  %v47 = vshrl.u32 %v46, 7
  %v48 = vsub.s32 3, %v47
  %v49 = vrot.slane %v32, %v48
  %v58 = vunpack.c.l.b16 %v28
  %v59 = vunpack.c.h.b16 %v28
  %v60 = vunpack.c.l.b16 %v29
  %v61 = vunpack.c.h.b16 %v29
  %v62 = vunpack.c.l.b16 %v30
  %v63 = vunpack.c.h.b16 %v30
  %v64 = vunpack.c.l.b16 %v31
  %v65 = vunpack.c.h.b16 %v31
  %v66 = vpack.c.b16 %v62, %v58
  %v67 = vpack.c.b16 %v63, %v59
  %v68 = vpack.c.b16 %v64, %v60
  %v69 = vpack.c.b16 %v65, %v61
  %vm74 = vcmask 130048
  %v76 = vsel %vm74, %v27, 0
  %78 = vmatprep.subr.bf16.mxu0 0
  %79 = vmatpush1.bf16.msra.mxu0 0
  %80 = vmatprep.subr.bf16.mxu0 0
  %81 = vmatpush1.bf16.msra.mxu0 0
  %82 = vmatprep.subr.bf16.mxu0 0
  %83 = vmatpush1.bf16.msra.mxu0 0
  %84 = vmatprep.subr.bf16.mxu0 0
  %85 = vmatpush1.bf16.msra.mxu0 0
  %86 = vmatprep.subr.bf16.mxu0 0
  %87 = vmatpush1.bf16.msra.mxu0 0
  %88 = vmatprep.subr.bf16.mxu0 0
  %89 = vmatpush1.bf16.msra.mxu0 0
  %90 = vmatprep.subr.bf16.mxu0 0
  %91 = vmatpush1.bf16.msra.mxu0 0
  %92 = vmatprep.subr.bf16.mxu0 %v67
  %93 = vmatpush1.bf16.msra.mxu0 %v66
  %94 = vmatprep.subr.bf16.mxu0 0
  %95 = vmatpush2.bf16.msra.mxu0 0
  %96 = vmatprep.subr.bf16.mxu0 0
  %97 = vmatpush2.bf16.msra.mxu0 0
  %98 = vmatprep.subr.bf16.mxu0 0
  %99 = vmatpush2.bf16.msra.mxu0 0
  %100 = vmatprep.subr.bf16.mxu0 0
  %101 = vmatpush2.bf16.msra.mxu0 0
  %102 = vmatprep.subr.bf16.mxu0 0
  %103 = vmatpush2.bf16.msra.mxu0 0
  %104 = vmatprep.subr.bf16.mxu0 0
  %105 = vmatpush2.bf16.msra.mxu0 0
  %106 = vmatprep.subr.bf16.mxu0 0
  %107 = vmatpush2.bf16.msra.mxu0 0
  %108 = vmatprep.subr.bf16.mxu0 0
  %109 = vmatpush2.bf16.msra.mxu0 0
  %110 = vmatprep.mubr.bf16.mxu0 0
  %111 = vmatmul.mubr.bf16.gmra.mxu0 %v76
  %v112 = vpop.f32.mrf.mxu0
  %v113 = vadd.f32 %v37, %v112
  %v114 = vpop.f32.mrf.mxu0
  %v115 = vadd.f32 %v41, %v114
  %v116 = vpop.f32.mrf.mxu0
  %v117 = vpop.f32.mrf.mxu0
  %118 = vdwg.mxu0
  %119 = vmatprep.subr.bf16.mxu0 0
  %120 = vmatpush1.bf16.msra.mxu0 0
  %121 = vmatprep.subr.bf16.mxu0 0
  %122 = vmatpush1.bf16.msra.mxu0 0
  %123 = vmatprep.subr.bf16.mxu0 0
  %124 = vmatpush1.bf16.msra.mxu0 0
  %125 = vmatprep.subr.bf16.mxu0 0
  %126 = vmatpush1.bf16.msra.mxu0 0
  %127 = vmatprep.subr.bf16.mxu0 0
  %128 = vmatpush1.bf16.msra.mxu0 0
  %129 = vmatprep.subr.bf16.mxu0 0
  %130 = vmatpush1.bf16.msra.mxu0 0
  %131 = vmatprep.subr.bf16.mxu0 0
  %132 = vmatpush1.bf16.msra.mxu0 0
  %133 = vmatprep.subr.bf16.mxu0 %v69
  %134 = vmatpush1.bf16.msra.mxu0 %v68
  %135 = vmatprep.subr.bf16.mxu0 0
  %136 = vmatpush2.bf16.msra.mxu0 0
  %137 = vmatprep.subr.bf16.mxu0 0
  %138 = vmatpush2.bf16.msra.mxu0 0
  %139 = vmatprep.subr.bf16.mxu0 0
  %140 = vmatpush2.bf16.msra.mxu0 0
  %141 = vmatprep.subr.bf16.mxu0 0
  %142 = vmatpush2.bf16.msra.mxu0 0
  %143 = vmatprep.subr.bf16.mxu0 0
  %144 = vmatpush2.bf16.msra.mxu0 0
  %145 = vmatprep.subr.bf16.mxu0 0
  %146 = vmatpush2.bf16.msra.mxu0 0
  %147 = vmatprep.subr.bf16.mxu0 0
  %148 = vmatpush2.bf16.msra.mxu0 0
  %149 = vmatprep.subr.bf16.mxu0 0
  %150 = vmatpush2.bf16.msra.mxu0 0
  %151 = vmatprep.mubr.bf16.mxu0 0
  %152 = vmatmul.mubr.bf16.gmra.mxu0 %v76
  %v153 = vpop.f32.mrf.mxu0
  %v154 = vadd.f32 %v45, %v153
  %v155 = vpop.f32.mrf.mxu0
  %v156 = vadd.f32 %v49, %v155
  %v157 = vpop.f32.mrf.mxu0
  %v158 = vpop.f32.mrf.mxu0
  %159 = vdwg.mxu0
  %vm160 = vcmp.ge.f32.partialorder %v113, 0.0
  %vm161 = vcmp.ge.f32.partialorder %v115, 0.0
  %vm162 = vcmp.ge.f32.partialorder %v154, 0.0
  %vm163 = vcmp.ge.f32.partialorder %v156, 0.0
  %v164 = vmul.f32 %v113, 0.01
  %v165 = vmul.f32 %v115, 0.01
  %v166 = vmul.f32 %v154, 0.01
  %v167 = vmul.f32 %v156, 0.01
  %v168 = vsel %vm160, %v113, %v164
  %v169 = vsel %vm161, %v115, %v165
  %v170 = vsel %vm162, %v154, %v166
  %v171 = vsel %vm163, %v156, %v167
  %v172 = vpack.c.bf16 %v168, %v168
  %v173 = vpack.c.bf16 %v169, %v169
  %v174 = vpack.c.bf16 %v170, %v170
  %v175 = vpack.c.bf16 %v171, %v171
  %v176 = vld [vmem:[%s3] sm:$0xff]
  %v177 = vld [vmem:[%s3 + $0x8] sm:$0xff]
  %v178 = vld [vmem:[%s3 + $0x10] sm:$0xff]
  %v179 = vld [vmem:[%s3 + $0x18] sm:$0xff]
  %v180 = vld [vmem:[%s3 + $0x20] sm:$0xff]
  %v181 = vld [vmem:[%s3 + $0x28] sm:$0xff]
  %v182 = vld [vmem:[%s3 + $0x30] sm:$0xff]
  %v183 = vld [vmem:[%s3 + $0x38] sm:$0xff]
  %v184 = vld [vmem:[%s3 + $0x40] sm:$0xff]
  %v185 = vld [vmem:[%s3 + $0x48] sm:$0xff]
  %v186 = vld [vmem:[%s3 + $0x50] sm:$0xff]
  %v187 = vld [vmem:[%s3 + $0x58] sm:$0xff]
  %v188 = vld [vmem:[%s3 + $0x60] sm:$0xff]
  %v189 = vld [vmem:[%s3 + $0x68] sm:$0xff]
  %v190 = vld [vmem:[%s3 + $0x70] sm:$0xff]
  %v191 = vld [vmem:[%s3 + $0x78] sm:$0xff]
  %v192 = vld [vmem:[%s3 + $0x80] sm:$0xff]
  %v193 = vld [vmem:[%s3 + $0x88] sm:$0xff]
  %v194 = vld [vmem:[%s3 + $0x90] sm:$0xff]
  %v195 = vld [vmem:[%s3 + $0x98] sm:$0xff]
  %v196 = vld [vmem:[%s3 + $0xa0] sm:$0xff]
  %v197 = vld [vmem:[%s3 + $0xa8] sm:$0xff]
  %v198 = vld [vmem:[%s3 + $0xb0] sm:$0xff]
  %v199 = vld [vmem:[%s3 + $0xb8] sm:$0xff]
  %v200 = vld [vmem:[%s3 + $0xc0] sm:$0xff]
  %v201 = vld [vmem:[%s3 + $0xc8] sm:$0xff]
  %v202 = vld [vmem:[%s3 + $0xd0] sm:$0xff]
  %v203 = vld [vmem:[%s3 + $0xd8] sm:$0xff]
  %v204 = vld [vmem:[%s3 + $0xe0] sm:$0xff]
  %v205 = vld [vmem:[%s3 + $0xe8] sm:$0xff]
  %v206 = vld [vmem:[%s3 + $0xf0] sm:$0xff]
  %v207 = vld [vmem:[%s3 + $0xf8] sm:$0xff]
  %v208 = vld [vmem:[%s3 + $0x100] sm:$0xff]
  %v209 = vld [vmem:[%s3 + $0x108] sm:$0xff]
  %v210 = vld [vmem:[%s3 + $0x110] sm:$0xff]
  %v211 = vld [vmem:[%s3 + $0x118] sm:$0xff]
  %v212 = vld [vmem:[%s3 + $0x120] sm:$0xff]
  %v213 = vld [vmem:[%s3 + $0x128] sm:$0xff]
  %v214 = vld [vmem:[%s3 + $0x130] sm:$0xff]
  %v215 = vld [vmem:[%s3 + $0x138] sm:$0xff]
  %v216 = vld [vmem:[%s3 + $0x140] sm:$0xff]
  %v217 = vld [vmem:[%s3 + $0x148] sm:$0xff]
  %v218 = vld [vmem:[%s3 + $0x150] sm:$0xff]
  %v219 = vld [vmem:[%s3 + $0x158] sm:$0xff]
  %v220 = vld [vmem:[%s3 + $0x160] sm:$0xff]
  %v221 = vld [vmem:[%s3 + $0x168] sm:$0xff]
  %v222 = vld [vmem:[%s3 + $0x170] sm:$0xff]
  %v223 = vld [vmem:[%s3 + $0x178] sm:$0xff]
  %v224 = vld [vmem:[%s3 + $0x180] sm:$0xff]
  %v225 = vld [vmem:[%s3 + $0x188] sm:$0xff]
  %v226 = vld [vmem:[%s3 + $0x190] sm:$0xff]
  %v227 = vld [vmem:[%s3 + $0x198] sm:$0xff]
  %v228 = vld [vmem:[%s3 + $0x1a0] sm:$0xff]
  %v229 = vld [vmem:[%s3 + $0x1a8] sm:$0xff]
  %v230 = vld [vmem:[%s3 + $0x1b0] sm:$0xff]
  %v231 = vld [vmem:[%s3 + $0x1b8] sm:$0xff]
  %v232 = vld [vmem:[%s3 + $0x1c0] sm:$0xff]
  %v233 = vld [vmem:[%s3 + $0x1c8] sm:$0xff]
  %v234 = vld [vmem:[%s3 + $0x1d0] sm:$0xff]
  %v235 = vld [vmem:[%s3 + $0x1d8] sm:$0xff]
  %v236 = vld [vmem:[%s3 + $0x1e0] sm:$0xff]
  %v237 = vld [vmem:[%s3 + $0x1e8] sm:$0xff]
  %v238 = vld [vmem:[%s3 + $0x1f0] sm:$0xff]
  %v239 = vld [vmem:[%s3 + $0x1f8] sm:$0xff]
  %v240 = vld [vmem:[%s4] sm:$0x3]
  %v242 = vlaneseq
  %v243 = vshrl.u32 %v242, 7
  %v244 = vsub.s32 0, %v243
  %v245 = vrot.slane %v240, %v244
  %v246 = vlaneseq
  %v247 = vshrl.u32 %v246, 7
  %v248 = vsub.s32 1, %v247
  %v249 = vrot.slane %v240, %v248
  %v316 = vunpack.c.l.b16 %v176
  %v317 = vunpack.c.h.b16 %v176
  %v318 = vunpack.c.l.b16 %v177
  %v319 = vunpack.c.h.b16 %v177
  %v320 = vunpack.c.l.b16 %v178
  %v321 = vunpack.c.h.b16 %v178
  %v322 = vunpack.c.l.b16 %v179
  %v323 = vunpack.c.h.b16 %v179
  %v324 = vunpack.c.l.b16 %v180
  %v325 = vunpack.c.h.b16 %v180
  %v326 = vunpack.c.l.b16 %v181
  %v327 = vunpack.c.h.b16 %v181
  %v328 = vunpack.c.l.b16 %v182
  %v329 = vunpack.c.h.b16 %v182
  %v330 = vunpack.c.l.b16 %v183
  %v331 = vunpack.c.h.b16 %v183
  %v332 = vunpack.c.l.b16 %v184
  %v333 = vunpack.c.h.b16 %v184
  %v334 = vunpack.c.l.b16 %v185
  %v335 = vunpack.c.h.b16 %v185
  %v336 = vunpack.c.l.b16 %v186
  %v337 = vunpack.c.h.b16 %v186
  %v338 = vunpack.c.l.b16 %v187
  %v339 = vunpack.c.h.b16 %v187
  %v340 = vunpack.c.l.b16 %v188
  %v341 = vunpack.c.h.b16 %v188
  %v342 = vunpack.c.l.b16 %v189
  %v343 = vunpack.c.h.b16 %v189
  %v344 = vunpack.c.l.b16 %v190
  %v345 = vunpack.c.h.b16 %v190
  %v346 = vunpack.c.l.b16 %v191
  %v347 = vunpack.c.h.b16 %v191
  %v348 = vunpack.c.l.b16 %v192
  %v349 = vunpack.c.h.b16 %v192
  %v350 = vunpack.c.l.b16 %v193
  %v351 = vunpack.c.h.b16 %v193
  %v352 = vunpack.c.l.b16 %v194
  %v353 = vunpack.c.h.b16 %v194
  %v354 = vunpack.c.l.b16 %v195
  %v355 = vunpack.c.h.b16 %v195
  %v356 = vunpack.c.l.b16 %v196
  %v357 = vunpack.c.h.b16 %v196
  %v358 = vunpack.c.l.b16 %v197
  %v359 = vunpack.c.h.b16 %v197
  %v360 = vunpack.c.l.b16 %v198
  %v361 = vunpack.c.h.b16 %v198
  %v362 = vunpack.c.l.b16 %v199
  %v363 = vunpack.c.h.b16 %v199
  %v364 = vunpack.c.l.b16 %v200
  %v365 = vunpack.c.h.b16 %v200
  %v366 = vunpack.c.l.b16 %v201
  %v367 = vunpack.c.h.b16 %v201
  %v368 = vunpack.c.l.b16 %v202
  %v369 = vunpack.c.h.b16 %v202
  %v370 = vunpack.c.l.b16 %v203
  %v371 = vunpack.c.h.b16 %v203
  %v372 = vunpack.c.l.b16 %v204
  %v373 = vunpack.c.h.b16 %v204
  %v374 = vunpack.c.l.b16 %v205
  %v375 = vunpack.c.h.b16 %v205
  %v376 = vunpack.c.l.b16 %v206
  %v377 = vunpack.c.h.b16 %v206
  %v378 = vunpack.c.l.b16 %v207
  %v379 = vunpack.c.h.b16 %v207
  %v380 = vunpack.c.l.b16 %v208
  %v381 = vunpack.c.h.b16 %v208
  %v382 = vunpack.c.l.b16 %v209
  %v383 = vunpack.c.h.b16 %v209
  %v384 = vunpack.c.l.b16 %v210
  %v385 = vunpack.c.h.b16 %v210
  %v386 = vunpack.c.l.b16 %v211
  %v387 = vunpack.c.h.b16 %v211
  %v388 = vunpack.c.l.b16 %v212
  %v389 = vunpack.c.h.b16 %v212
  %v390 = vunpack.c.l.b16 %v213
  %v391 = vunpack.c.h.b16 %v213
  %v392 = vunpack.c.l.b16 %v214
  %v393 = vunpack.c.h.b16 %v214
  %v394 = vunpack.c.l.b16 %v215
  %v395 = vunpack.c.h.b16 %v215
  %v396 = vunpack.c.l.b16 %v216
  %v397 = vunpack.c.h.b16 %v216
  %v398 = vunpack.c.l.b16 %v217
  %v399 = vunpack.c.h.b16 %v217
  %v400 = vunpack.c.l.b16 %v218
  %v401 = vunpack.c.h.b16 %v218
  %v402 = vunpack.c.l.b16 %v219
  %v403 = vunpack.c.h.b16 %v219
  %v404 = vunpack.c.l.b16 %v220
  %v405 = vunpack.c.h.b16 %v220
  %v406 = vunpack.c.l.b16 %v221
  %v407 = vunpack.c.h.b16 %v221
  %v408 = vunpack.c.l.b16 %v222
  %v409 = vunpack.c.h.b16 %v222
  %v410 = vunpack.c.l.b16 %v223
  %v411 = vunpack.c.h.b16 %v223
  %v412 = vunpack.c.l.b16 %v224
  %v413 = vunpack.c.h.b16 %v224
  %v414 = vunpack.c.l.b16 %v225
  %v415 = vunpack.c.h.b16 %v225
  %v416 = vunpack.c.l.b16 %v226
  %v417 = vunpack.c.h.b16 %v226
  %v418 = vunpack.c.l.b16 %v227
  %v419 = vunpack.c.h.b16 %v227
  %v420 = vunpack.c.l.b16 %v228
  %v421 = vunpack.c.h.b16 %v228
  %v422 = vunpack.c.l.b16 %v229
  %v423 = vunpack.c.h.b16 %v229
  %v424 = vunpack.c.l.b16 %v230
  %v425 = vunpack.c.h.b16 %v230
  %v426 = vunpack.c.l.b16 %v231
  %v427 = vunpack.c.h.b16 %v231
  %v428 = vunpack.c.l.b16 %v232
  %v429 = vunpack.c.h.b16 %v232
  %v430 = vunpack.c.l.b16 %v233
  %v431 = vunpack.c.h.b16 %v233
  %v432 = vunpack.c.l.b16 %v234
  %v433 = vunpack.c.h.b16 %v234
  %v434 = vunpack.c.l.b16 %v235
  %v435 = vunpack.c.h.b16 %v235
  %v436 = vunpack.c.l.b16 %v236
  %v437 = vunpack.c.h.b16 %v236
  %v438 = vunpack.c.l.b16 %v237
  %v439 = vunpack.c.h.b16 %v237
  %v440 = vunpack.c.l.b16 %v238
  %v441 = vunpack.c.h.b16 %v238
  %v442 = vunpack.c.l.b16 %v239
  %v443 = vunpack.c.h.b16 %v239
  %v444 = vpack.c.b16 %v318, %v316
  %v445 = vpack.c.b16 %v319, %v317
  %v446 = vpack.c.b16 %v322, %v320
  %v447 = vpack.c.b16 %v323, %v321
  %v448 = vpack.c.b16 %v326, %v324
  %v449 = vpack.c.b16 %v327, %v325
  %v450 = vpack.c.b16 %v330, %v328
  %v451 = vpack.c.b16 %v331, %v329
  %v452 = vpack.c.b16 %v334, %v332
  %v453 = vpack.c.b16 %v335, %v333
  %v454 = vpack.c.b16 %v338, %v336
  %v455 = vpack.c.b16 %v339, %v337
  %v456 = vpack.c.b16 %v342, %v340
  %v457 = vpack.c.b16 %v343, %v341
  %v458 = vpack.c.b16 %v346, %v344
  %v459 = vpack.c.b16 %v347, %v345
  %v460 = vpack.c.b16 %v350, %v348
  %v461 = vpack.c.b16 %v351, %v349
  %v462 = vpack.c.b16 %v354, %v352
  %v463 = vpack.c.b16 %v355, %v353
  %v464 = vpack.c.b16 %v358, %v356
  %v465 = vpack.c.b16 %v359, %v357
  %v466 = vpack.c.b16 %v362, %v360
  %v467 = vpack.c.b16 %v363, %v361
  %v468 = vpack.c.b16 %v366, %v364
  %v469 = vpack.c.b16 %v367, %v365
  %v470 = vpack.c.b16 %v370, %v368
  %v471 = vpack.c.b16 %v371, %v369
  %v472 = vpack.c.b16 %v374, %v372
  %v473 = vpack.c.b16 %v375, %v373
  %v474 = vpack.c.b16 %v378, %v376
  %v475 = vpack.c.b16 %v379, %v377
  %v476 = vpack.c.b16 %v382, %v380
  %v477 = vpack.c.b16 %v383, %v381
  %v478 = vpack.c.b16 %v386, %v384
  %v479 = vpack.c.b16 %v387, %v385
  %v480 = vpack.c.b16 %v390, %v388
  %v481 = vpack.c.b16 %v391, %v389
  %v482 = vpack.c.b16 %v394, %v392
  %v483 = vpack.c.b16 %v395, %v393
  %v484 = vpack.c.b16 %v398, %v396
  %v485 = vpack.c.b16 %v399, %v397
  %v486 = vpack.c.b16 %v402, %v400
  %v487 = vpack.c.b16 %v403, %v401
  %v488 = vpack.c.b16 %v406, %v404
  %v489 = vpack.c.b16 %v407, %v405
  %v490 = vpack.c.b16 %v410, %v408
  %v491 = vpack.c.b16 %v411, %v409
  %v492 = vpack.c.b16 %v414, %v412
  %v493 = vpack.c.b16 %v415, %v413
  %v494 = vpack.c.b16 %v418, %v416
  %v495 = vpack.c.b16 %v419, %v417
  %v496 = vpack.c.b16 %v422, %v420
  %v497 = vpack.c.b16 %v423, %v421
  %v498 = vpack.c.b16 %v426, %v424
  %v499 = vpack.c.b16 %v427, %v425
  %v500 = vpack.c.b16 %v430, %v428
  %v501 = vpack.c.b16 %v431, %v429
  %v502 = vpack.c.b16 %v434, %v432
  %v503 = vpack.c.b16 %v435, %v433
  %v504 = vpack.c.b16 %v438, %v436
  %v505 = vpack.c.b16 %v439, %v437
  %v506 = vpack.c.b16 %v442, %v440
  %v507 = vpack.c.b16 %v443, %v441
  %572 = vmatprep.subr.bf16.mxu0 %v459
  %573 = vmatpush1.bf16.msra.mxu0 %v458
  %574 = vmatprep.subr.bf16.mxu0 %v457
  %575 = vmatpush1.bf16.msra.mxu0 %v456
  %576 = vmatprep.subr.bf16.mxu0 %v455
  %577 = vmatpush1.bf16.msra.mxu0 %v454
  %578 = vmatprep.subr.bf16.mxu0 %v453
  %579 = vmatpush1.bf16.msra.mxu0 %v452
  %580 = vmatprep.subr.bf16.mxu0 %v451
  %581 = vmatpush1.bf16.msra.mxu0 %v450
  %582 = vmatprep.subr.bf16.mxu0 %v449
  %583 = vmatpush1.bf16.msra.mxu0 %v448
  %584 = vmatprep.subr.bf16.mxu0 %v447
  %585 = vmatpush1.bf16.msra.mxu0 %v446
  %586 = vmatprep.subr.bf16.mxu0 %v445
  %587 = vmatpush1.bf16.msra.mxu0 %v444
  %588 = vmatprep.subr.bf16.mxu0 %v475
  %589 = vmatpush2.bf16.msra.mxu0 %v474
  %590 = vmatprep.subr.bf16.mxu0 %v473
  %591 = vmatpush2.bf16.msra.mxu0 %v472
  %592 = vmatprep.subr.bf16.mxu0 %v471
  %593 = vmatpush2.bf16.msra.mxu0 %v470
  %594 = vmatprep.subr.bf16.mxu0 %v469
  %595 = vmatpush2.bf16.msra.mxu0 %v468
  %596 = vmatprep.subr.bf16.mxu0 %v467
  %597 = vmatpush2.bf16.msra.mxu0 %v466
  %598 = vmatprep.subr.bf16.mxu0 %v465
  %599 = vmatpush2.bf16.msra.mxu0 %v464
  %600 = vmatprep.subr.bf16.mxu0 %v463
  %601 = vmatpush2.bf16.msra.mxu0 %v462
  %602 = vmatprep.subr.bf16.mxu0 %v461
  %603 = vmatpush2.bf16.msra.mxu0 %v460
  %604 = vmatprep.mubr.bf16.mxu0 %v173
  %605 = vmatmul.mubr.bf16.gmra.mxu0 %v172
  %v606 = vpop.f32.mrf.mxu0
  %v607 = vadd.f32 %v245, %v606
  %v608 = vpop.f32.mrf.mxu0
  %v609 = vadd.f32 %v249, %v608
  %v610 = vpop.f32.mrf.mxu0
  %v611 = vpop.f32.mrf.mxu0
  %612 = vdwg.mxu0
  %613 = vmatprep.subr.bf16.mxu0 %v491
  %614 = vmatpush1.bf16.msra.mxu0 %v490
  %615 = vmatprep.subr.bf16.mxu0 %v489
  %616 = vmatpush1.bf16.msra.mxu0 %v488
  %617 = vmatprep.subr.bf16.mxu0 %v487
  %618 = vmatpush1.bf16.msra.mxu0 %v486
  %619 = vmatprep.subr.bf16.mxu0 %v485
  %620 = vmatpush1.bf16.msra.mxu0 %v484
  %621 = vmatprep.subr.bf16.mxu0 %v483
  %622 = vmatpush1.bf16.msra.mxu0 %v482
  %623 = vmatprep.subr.bf16.mxu0 %v481
  %624 = vmatpush1.bf16.msra.mxu0 %v480
  %625 = vmatprep.subr.bf16.mxu0 %v479
  %626 = vmatpush1.bf16.msra.mxu0 %v478
  %627 = vmatprep.subr.bf16.mxu0 %v477
  %628 = vmatpush1.bf16.msra.mxu0 %v476
  %629 = vmatprep.subr.bf16.mxu0 %v507
  %630 = vmatpush2.bf16.msra.mxu0 %v506
  %631 = vmatprep.subr.bf16.mxu0 %v505
  %632 = vmatpush2.bf16.msra.mxu0 %v504
  %633 = vmatprep.subr.bf16.mxu0 %v503
  %634 = vmatpush2.bf16.msra.mxu0 %v502
  %635 = vmatprep.subr.bf16.mxu0 %v501
  %636 = vmatpush2.bf16.msra.mxu0 %v500
  %637 = vmatprep.subr.bf16.mxu0 %v499
  %638 = vmatpush2.bf16.msra.mxu0 %v498
  %639 = vmatprep.subr.bf16.mxu0 %v497
  %640 = vmatpush2.bf16.msra.mxu0 %v496
  %641 = vmatprep.subr.bf16.mxu0 %v495
  %642 = vmatpush2.bf16.msra.mxu0 %v494
  %643 = vmatprep.subr.bf16.mxu0 %v493
  %644 = vmatpush2.bf16.msra.mxu0 %v492
  %645 = vmatprep.mubr.bf16.mxu0 %v175
  %646 = vmatmul.mubr.bf16.gmra.mxu0 %v174
  %v647 = vpop.f32.mrf.mxu0
  %v648 = vadd.f32 %v607, %v647
  %v649 = vpop.f32.mrf.mxu0
  %v650 = vadd.f32 %v609, %v649
  %v651 = vpop.f32.mrf.mxu0
  %v652 = vpop.f32.mrf.mxu0
  %653 = vdwg.mxu0
  %vm654 = vcmp.ge.f32.partialorder %v648, 0.0
  %vm655 = vcmp.ge.f32.partialorder %v650, 0.0
  %v656 = vmul.f32 %v648, 0.01
  %v657 = vmul.f32 %v650, 0.01
  %v658 = vsel %vm654, %v648, %v656
  %v659 = vsel %vm655, %v650, %v657
  %v660 = vpack.c.bf16 %v658, %v658
  %v661 = vpack.c.bf16 %v659, %v659
  %v662 = vld [vmem:[%s5] sm:$0xf]
  %v663 = vld [vmem:[%s5 + $0x4] sm:$0xf]
  %v664 = vld [vmem:[%s5 + $0x8] sm:$0xf]
  %v665 = vld [vmem:[%s5 + $0xc] sm:$0xf]
  %v666 = vld [vmem:[%s5 + $0x10] sm:$0xf]
  %v667 = vld [vmem:[%s5 + $0x14] sm:$0xf]
  %v668 = vld [vmem:[%s5 + $0x18] sm:$0xf]
  %v669 = vld [vmem:[%s5 + $0x1c] sm:$0xf]
  %v670 = vld [vmem:[%s5 + $0x20] sm:$0xf]
  %v671 = vld [vmem:[%s5 + $0x24] sm:$0xf]
  %v672 = vld [vmem:[%s5 + $0x28] sm:$0xf]
  %v673 = vld [vmem:[%s5 + $0x2c] sm:$0xf]
  %v674 = vld [vmem:[%s5 + $0x30] sm:$0xf]
  %v675 = vld [vmem:[%s5 + $0x34] sm:$0xf]
  %v676 = vld [vmem:[%s5 + $0x38] sm:$0xf]
  %v677 = vld [vmem:[%s5 + $0x3c] sm:$0xf]
  %v678 = vld [vmem:[%s5 + $0x40] sm:$0xf]
  %v679 = vld [vmem:[%s5 + $0x44] sm:$0xf]
  %v680 = vld [vmem:[%s5 + $0x48] sm:$0xf]
  %v681 = vld [vmem:[%s5 + $0x4c] sm:$0xf]
  %v682 = vld [vmem:[%s5 + $0x50] sm:$0xf]
  %v683 = vld [vmem:[%s5 + $0x54] sm:$0xf]
  %v684 = vld [vmem:[%s5 + $0x58] sm:$0xf]
  %v685 = vld [vmem:[%s5 + $0x5c] sm:$0xf]
  %v686 = vld [vmem:[%s5 + $0x60] sm:$0xf]
  %v687 = vld [vmem:[%s5 + $0x64] sm:$0xf]
  %v688 = vld [vmem:[%s5 + $0x68] sm:$0xf]
  %v689 = vld [vmem:[%s5 + $0x6c] sm:$0xf]
  %v690 = vld [vmem:[%s5 + $0x70] sm:$0xf]
  %v691 = vld [vmem:[%s5 + $0x74] sm:$0xf]
  %v692 = vld [vmem:[%s5 + $0x78] sm:$0xf]
  %v693 = vld [vmem:[%s5 + $0x7c] sm:$0xf]
  %v694 = vld [vmem:[%s6] sm:$0x1]
  %v696 = vlaneseq
  %v697 = vshrl.u32 %v696, 7
  %v698 = vsub.s32 0, %v697
  %v699 = vrot.slane %v694, %v698
  %v733 = vunpack.c.l.b16 %v662
  %v734 = vunpack.c.l.b16 %v663
  %v735 = vunpack.c.l.b16 %v664
  %v736 = vunpack.c.l.b16 %v665
  %v737 = vunpack.c.l.b16 %v666
  %v738 = vunpack.c.l.b16 %v667
  %v739 = vunpack.c.l.b16 %v668
  %v740 = vunpack.c.l.b16 %v669
  %v741 = vunpack.c.l.b16 %v670
  %v742 = vunpack.c.l.b16 %v671
  %v743 = vunpack.c.l.b16 %v672
  %v744 = vunpack.c.l.b16 %v673
  %v745 = vunpack.c.l.b16 %v674
  %v746 = vunpack.c.l.b16 %v675
  %v747 = vunpack.c.l.b16 %v676
  %v748 = vunpack.c.l.b16 %v677
  %v749 = vunpack.c.l.b16 %v678
  %v750 = vunpack.c.l.b16 %v679
  %v751 = vunpack.c.l.b16 %v680
  %v752 = vunpack.c.l.b16 %v681
  %v753 = vunpack.c.l.b16 %v682
  %v754 = vunpack.c.l.b16 %v683
  %v755 = vunpack.c.l.b16 %v684
  %v756 = vunpack.c.l.b16 %v685
  %v757 = vunpack.c.l.b16 %v686
  %v758 = vunpack.c.l.b16 %v687
  %v759 = vunpack.c.l.b16 %v688
  %v760 = vunpack.c.l.b16 %v689
  %v761 = vunpack.c.l.b16 %v690
  %v762 = vunpack.c.l.b16 %v691
  %v763 = vunpack.c.l.b16 %v692
  %v764 = vunpack.c.l.b16 %v693
  %v765 = vpack.c.b16 %v734, %v733
  %v766 = vpack.c.b16 %v736, %v735
  %v767 = vpack.c.b16 %v738, %v737
  %v768 = vpack.c.b16 %v740, %v739
  %v769 = vpack.c.b16 %v742, %v741
  %v770 = vpack.c.b16 %v744, %v743
  %v771 = vpack.c.b16 %v746, %v745
  %v772 = vpack.c.b16 %v748, %v747
  %v773 = vpack.c.b16 %v750, %v749
  %v774 = vpack.c.b16 %v752, %v751
  %v775 = vpack.c.b16 %v754, %v753
  %v776 = vpack.c.b16 %v756, %v755
  %v777 = vpack.c.b16 %v758, %v757
  %v778 = vpack.c.b16 %v760, %v759
  %v779 = vpack.c.b16 %v762, %v761
  %v780 = vpack.c.b16 %v764, %v763
  %797 = vmatprep.subr.bf16.mxu0 0
  %798 = vmatpush1.bf16.msra.mxu0 %v772
  %799 = vmatprep.subr.bf16.mxu0 0
  %800 = vmatpush1.bf16.msra.mxu0 %v771
  %801 = vmatprep.subr.bf16.mxu0 0
  %802 = vmatpush1.bf16.msra.mxu0 %v770
  %803 = vmatprep.subr.bf16.mxu0 0
  %804 = vmatpush1.bf16.msra.mxu0 %v769
  %805 = vmatprep.subr.bf16.mxu0 0
  %806 = vmatpush1.bf16.msra.mxu0 %v768
  %807 = vmatprep.subr.bf16.mxu0 0
  %808 = vmatpush1.bf16.msra.mxu0 %v767
  %809 = vmatprep.subr.bf16.mxu0 0
  %810 = vmatpush1.bf16.msra.mxu0 %v766
  %811 = vmatprep.subr.bf16.mxu0 0
  %812 = vmatpush1.bf16.msra.mxu0 %v765
  %813 = vmatprep.subr.bf16.mxu0 0
  %814 = vmatpush2.bf16.msra.mxu0 %v780
  %815 = vmatprep.subr.bf16.mxu0 0
  %816 = vmatpush2.bf16.msra.mxu0 %v779
  %817 = vmatprep.subr.bf16.mxu0 0
  %818 = vmatpush2.bf16.msra.mxu0 %v778
  %819 = vmatprep.subr.bf16.mxu0 0
  %820 = vmatpush2.bf16.msra.mxu0 %v777
  %821 = vmatprep.subr.bf16.mxu0 0
  %822 = vmatpush2.bf16.msra.mxu0 %v776
  %823 = vmatprep.subr.bf16.mxu0 0
  %824 = vmatpush2.bf16.msra.mxu0 %v775
  %825 = vmatprep.subr.bf16.mxu0 0
  %826 = vmatpush2.bf16.msra.mxu0 %v774
  %827 = vmatprep.subr.bf16.mxu0 0
  %828 = vmatpush2.bf16.msra.mxu0 %v773
  %829 = vmatprep.mubr.bf16.mxu0 %v661
  %830 = vmatmul.mubr.bf16.gmra.mxu0 %v660
  %v831 = vpop.f32.mrf.mxu0
  %v832 = vadd.f32 %v699, %v831
  %v833 = vpop.f32.mrf.mxu0
  %v834 = vpop.f32.mrf.mxu0
  %v835 = vpop.f32.mrf.mxu0
  %836 = vdwg.mxu0
  %v837 = vtanh.pop %v832
  %838 = vst [vmem:[%s7] sm:$0xff] %v837
  // Predicated region
  $region30: #{policy_network_forward.1} parent=0 // pred_check
    _
  $region31: #{policy_network_forward.1} parent=0 // pred_check_branch
    %840 = sbr.rel (0) target = $region33
  $region32: #{policy_network_forward.1} parent=0 // pred_region
    _
  $region33: #{policy_network_forward.1} parent=0 // pred_fallthru
    _
  // Predicated region
  $region34: #{policy_network_forward.1} parent=0 // pred_check
    _
  $region35: #{policy_network_forward.1} parent=0 // pred_check_branch
    %842 = sbr.rel (0) target = $region37
  $region36: #{policy_network_forward.1} parent=0 // pred_region
    _
  $region37: #{policy_network_forward.1} parent=0 // pred_fallthru
    _

</llo_original>
